<compile_context>
chip_gen: v7x
topology: tpu7x:2x2x1
jax: 0.10.0
libtpu: 0.0.40
codegen_flags: <defaults>
</compile_context>

<pallas_src>
import functools
import numpy as np
import jax
import jax.numpy as jnp
from jax import lax
from jax.experimental import pallas as pl
from jax.experimental.pallas import tpu as pltpu


def _round_up(x, m):
    return ((x + m - 1) // m) * m


def _compute_elem(pred_ref, target_ref, sigma_ref, weight_ref, loss_weight):
    """Elementwise Gaussian-NLL for one VMEM tile (VPU/EUP only)."""
    diff = pred_ref[...] - target_ref[...]
    s = sigma_ref[...]
    inv_s = 1.0 / s                                    # one EUP divide, reused
    # pdf = exp(-diff^2 / (2*s)) / sqrt(2*pi*s); rsqrt replaces sqrt + divide.
    pdf = jnp.exp(diff * diff * (-0.5) * inv_s) * lax.rsqrt((2.0 * jnp.pi) * s)
    # |-log(pdf + 1e-9) / 2| * loss_weight  ==  |log(pdf + 1e-9)| * (0.5*loss_weight)
    elem = jnp.abs(jnp.log(pdf + 1e-9)) * jnp.float32(0.5 * loss_weight)
    if weight_ref is not None:
        elem = elem * weight_ref[...]
    return elem


def _nll_elem_kernel(pred_ref, target_ref, sigma_ref, *rest,
                     loss_weight, has_weight):
    """reduction='none' variant: write the elementwise loss tile, no reduce."""
    if has_weight:
        weight_ref, loss_ref = rest
    else:
        weight_ref = None
        (loss_ref,) = rest
    loss_ref[...] = _compute_elem(pred_ref, target_ref, sigma_ref,
                                  weight_ref, loss_weight)


def _nll_reduce_kernel(pred_ref, target_ref, sigma_ref, *rest,
                       loss_weight, has_weight, num_valid,
                       block_rows, block_cols, needs_mask):
    """reduction='sum'/'mean' variant: per-tile vector partial sum only."""
    if has_weight:
        weight_ref, psum_ref = rest
    else:
        weight_ref = None
        (psum_ref,) = rest

    elem = _compute_elem(pred_ref, target_ref, sigma_ref, weight_ref, loss_weight)

    if needs_mask:
        # Mask out wrapper-added padding (computed in-kernel; no extra HBM stream).
        row0 = pl.program_id(0) * block_rows
        rid = lax.broadcasted_iota(jnp.int32, (block_rows, block_cols), 0) + row0
        cid = lax.broadcasted_iota(jnp.int32, (block_rows, block_cols), 1)
        elem = jnp.where(rid * block_cols + cid < num_valid, elem, 0.0)

    # Vector partial sum (8, block_cols): unrolled sublane-group adds; no
    # cross-lane XLU reduce and no scalar RMW in the steady-state loop.
    part = elem[0:8, :]
    for g in range(1, block_rows // 8):
        part = part + elem[g * 8:(g + 1) * 8, :]
    psum_ref[...] = part


def nll_loss_pallas(pred, target, sigma, weight=None, *,
                    reduction='mean', avg_factor=None, loss_weight=1.0,
                    cols=512, max_block_rows=512):
    """Pallas implementation of NLLLoss.forward (mmdet weighted_loss semantics)."""
    assert reduction in ('none', 'mean', 'sum')
    assert pred.shape == target.shape == sigma.shape
    assert cols % 128 == 0 and max_block_rows % 8 == 0

    orig_shape = pred.shape
    M = int(pred.size)
    if M == 0:
        # torch branch: target.numel() == 0 -> pred.sum() * 0
        return jnp.sum(pred) * 0.0

    has_weight = weight is not None

    # Lane-dense padded slab: (padded_rows, cols) f32, tiled (block_rows, cols).
    rows = pl.cdiv(M, cols)
    block_rows = min(max_block_rows, _round_up(rows, 8))
    padded_rows = _round_up(rows, block_rows)
    num_tiles = padded_rows // block_rows
    padded_M = padded_rows * cols

    def prep(x, pad_value):
        flat = jnp.ravel(x).astype(jnp.float32)
        if padded_M > M:
            flat = jnp.pad(flat, (0, padded_M - M), constant_values=pad_value)
        return flat.reshape(padded_rows, cols)

    inputs = [prep(pred, 0.0), prep(target, 0.0), prep(sigma, 1.0)]
    if has_weight:
        assert weight.shape == pred.shape
        inputs.append(prep(weight, 0.0))

    tile_spec = pl.BlockSpec((block_rows, cols), lambda i: (i, 0))
    in_specs = [tile_spec] * len(inputs)
    cparams = pltpu.CompilerParams(dimension_semantics=("parallel",))

    if reduction == 'none':
        kernel = functools.partial(_nll_elem_kernel,
                                   loss_weight=float(loss_weight),
                                   has_weight=has_weight)
        loss_padded = pl.pallas_call(
            kernel,
            out_shape=jax.ShapeDtypeStruct((padded_rows, cols), jnp.float32),
            grid_spec=pltpu.PrefetchScalarGridSpec(
                num_scalar_prefetch=0,
                grid=(num_tiles,),
                in_specs=in_specs,
                out_specs=tile_spec),
            compiler_params=cparams,
        )(*inputs)
        # avg_factor with 'none' is invalid in mmdet; return elementwise loss.
        return loss_padded.reshape(-1)[:M].reshape(orig_shape)

    # 'sum' / 'mean': reduction-only kernel — no (N, D) elementwise writeback.
    kernel = functools.partial(_nll_reduce_kernel,
                               loss_weight=float(loss_weight),
                               has_weight=has_weight,
                               num_valid=M,
                               block_rows=block_rows,
                               block_cols=cols,
                               needs_mask=(padded_M > M))
    psum_spec = pl.BlockSpec((8, cols), lambda i: (i, 0))
    partials = pl.pallas_call(
        kernel,
        out_shape=jax.ShapeDtypeStruct((num_tiles * 8, cols), jnp.float32),
        grid_spec=pltpu.PrefetchScalarGridSpec(
            num_scalar_prefetch=0,
            grid=(num_tiles,),
            in_specs=in_specs,
            out_specs=psum_spec),
        compiler_params=cparams,
    )(*inputs)
    total = jnp.sum(partials)

    if reduction == 'sum':
        return total
    if avg_factor is None:
        return total / jnp.float32(M)
    return total / jnp.float32(avg_factor)


def _reference(pred, target, sigma, weight, reduction, avg_factor, loss_weight):
    pdf = jnp.exp(-(pred - target) ** 2 / sigma / 2.0) / jnp.sqrt(2.0 * jnp.pi * sigma)
    loss = jnp.abs(-jnp.log(pdf + 1e-9) / 2.0) * loss_weight
    if weight is not None:
        loss = loss * weight
    if reduction == 'none':
        return loss
    if reduction == 'sum':
        return jnp.sum(loss)
    if avg_factor is None:
        return jnp.mean(loss)
    return jnp.sum(loss) / avg_factor


if __name__ == "__main__":
    key = jax.random.PRNGKey(0)
    k1, k2, k3, k4 = jax.random.split(key, 4)

    # bbox-regression-like shapes: 64 boxes x 4 coords
    N, D = 64, 4
    pred = jax.random.normal(k1, (N, D), dtype=jnp.float32)
    target = jax.random.normal(k2, (N, D), dtype=jnp.float32)
    sigma = jax.nn.softplus(jax.random.normal(k3, (N, D), dtype=jnp.float32)) + 0.1
    weight = jax.random.uniform(k4, (N, D), dtype=jnp.float32)

    loss_weight = 1.0
    RTOL, ATOL = 1e-4, 1e-5

    # 'mean' reduction with weight (module default path)
    out = nll_loss_pallas(pred, target, sigma, weight,
                          reduction='mean', loss_weight=loss_weight)
    jax.block_until_ready(out)
    ref = _reference(pred, target, sigma, weight, 'mean', None, loss_weight)
    assert np.allclose(np.asarray(out), np.asarray(ref), rtol=RTOL, atol=ATOL)

    # 'none' reduction with weight (elementwise path)
    out = nll_loss_pallas(pred, target, sigma, weight,
                          reduction='none', loss_weight=loss_weight)
    jax.block_until_ready(out)
    ref = _reference(pred, target, sigma, weight, 'none', None, loss_weight)
    assert np.allclose(np.asarray(out), np.asarray(ref), rtol=RTOL, atol=ATOL)

    # 'mean' with avg_factor
    out = nll_loss_pallas(pred, target, sigma, weight,
                          reduction='mean', avg_factor=37.0, loss_weight=loss_weight)
    jax.block_until_ready(out)
    ref = _reference(pred, target, sigma, weight, 'mean', 37.0, loss_weight)
    assert np.allclose(np.asarray(out), np.asarray(ref), rtol=RTOL, atol=ATOL)

    # 'sum' without weight (weight-less kernel variant + padding mask)
    out = nll_loss_pallas(pred, target, sigma, None,
                          reduction='sum', loss_weight=2.0)
    jax.block_until_ready(out)
    ref = _reference(pred, target, sigma, None, 'sum', None, 2.0)
    assert np.allclose(np.asarray(out), np.asarray(ref), rtol=RTOL, atol=ATOL)

    # 'none' without weight (weight-less elementwise variant)
    out = nll_loss_pallas(pred, target, sigma, None,
                          reduction='none', loss_weight=loss_weight)
    jax.block_until_ready(out)
    ref = _reference(pred, target, sigma, None, 'none', None, loss_weight)
    assert np.allclose(np.asarray(out), np.asarray(ref), rtol=RTOL, atol=ATOL)

    # Ragged / multi-tile coverage: small tiles forced so the parallel grid,
    # padding mask and multi-tile partial-sum path are all exercised.
    N2, D2 = 1000, 4
    p2 = jax.random.normal(k1, (N2, D2), dtype=jnp.float32)
    t2 = jax.random.normal(k2, (N2, D2), dtype=jnp.float32)
    s2 = jax.nn.softplus(jax.random.normal(k3, (N2, D2), dtype=jnp.float32)) + 0.1
    out = nll_loss_pallas(p2, t2, s2, None, reduction='mean',
                          loss_weight=loss_weight, cols=128, max_block_rows=8)
    jax.block_until_ready(out)
    ref = _reference(p2, t2, s2, None, 'mean', None, loss_weight)
    assert np.allclose(np.asarray(out), np.asarray(ref), rtol=RTOL, atol=ATOL)

    print("KERNEL_OK")
</pallas_src>

<mosaic_0001>
module attributes {stable_mosaic.version = 11 : i64} {
  func.func @_nll_reduce_kernel(%arg0: i32, %arg1: memref<8x512xf32, #tpu.memory_space<vmem>>, %arg2: memref<8x512xf32, #tpu.memory_space<vmem>>, %arg3: memref<8x512xf32, #tpu.memory_space<vmem>>, %arg4: memref<8x512xf32, #tpu.memory_space<vmem>>, %arg5: memref<8x512xf32, #tpu.memory_space<vmem>>) attributes {dimension_semantics = [#tpu.dimension_semantics<parallel>], iteration_bounds = array<i64: 1>, scalar_prefetch = 0 : i64, scratch_operands = 0 : i64, tpu.core_type = #tpu.core_type<tc>, window_params = [{transform_indices = @transform_0, window_bounds = array<i64: 8, 512>}, {transform_indices = @transform_1, window_bounds = array<i64: 8, 512>}, {transform_indices = @transform_2, window_bounds = array<i64: 8, 512>}, {transform_indices = @transform_3, window_bounds = array<i64: 8, 512>}, {transform_indices = @transform_4, window_bounds = array<i64: 8, 512>}]} {
    %c0 = arith.constant 0 : index
    %c0_0 = arith.constant 0 : index
    %0 = vector.load %arg1[%c0, %c0_0] : memref<8x512xf32, #tpu.memory_space<vmem>>, vector<8x512xf32>
    %c0_1 = arith.constant 0 : index
    %c0_2 = arith.constant 0 : index
    %1 = vector.load %arg2[%c0_1, %c0_2] : memref<8x512xf32, #tpu.memory_space<vmem>>, vector<8x512xf32>
    %2 = arith.subf %0, %1 : vector<8x512xf32>
    %c0_3 = arith.constant 0 : index
    %c0_4 = arith.constant 0 : index
    %3 = vector.load %arg3[%c0_3, %c0_4] : memref<8x512xf32, #tpu.memory_space<vmem>>, vector<8x512xf32>
    %cst = arith.constant 1.000000e+00 : f32
    %4 = vector.broadcast %cst : f32 to vector<8x512xf32>
    %5 = arith.divf %4, %3 : vector<8x512xf32>
    %6 = arith.mulf %2, %2 : vector<8x512xf32>
    %cst_5 = arith.constant -5.000000e-01 : f32
    %7 = vector.broadcast %cst_5 : f32 to vector<8x512xf32>
    %8 = arith.mulf %6, %7 : vector<8x512xf32>
    %9 = arith.mulf %8, %5 : vector<8x512xf32>
    %10 = math.exp %9 : vector<8x512xf32>
    %cst_6 = arith.constant 6.28318548 : f32
    %11 = vector.broadcast %cst_6 : f32 to vector<8x512xf32>
    %12 = arith.mulf %11, %3 : vector<8x512xf32>
    %13 = math.rsqrt %12 : vector<8x512xf32>
    %14 = arith.mulf %10, %13 : vector<8x512xf32>
    %cst_7 = arith.constant 9.99999971E-10 : f32
    %15 = vector.broadcast %cst_7 : f32 to vector<8x512xf32>
    %16 = arith.addf %14, %15 : vector<8x512xf32>
    %17 = math.log %16 : vector<8x512xf32>
    %18 = math.absf %17 : vector<8x512xf32>
    %cst_8 = arith.constant 5.000000e-01 : f32
    %19 = vector.broadcast %cst_8 : f32 to vector<8x512xf32>
    %20 = arith.mulf %18, %19 : vector<8x512xf32>
    %c0_9 = arith.constant 0 : index
    %c0_10 = arith.constant 0 : index
    %21 = vector.load %arg4[%c0_9, %c0_10] : memref<8x512xf32, #tpu.memory_space<vmem>>, vector<8x512xf32>
    %22 = arith.mulf %20, %21 : vector<8x512xf32>
    %c8_i32 = arith.constant 8 : i32
    %23 = arith.muli %arg0, %c8_i32 : i32
    %24 = tpu.iota {dimensions = array<i32: 0>} : vector<8x512xi32>
    %25 = vector.broadcast %23 : i32 to vector<8x512xi32>
    %26 = arith.addi %24, %25 : vector<8x512xi32>
    %27 = tpu.iota {dimensions = array<i32: 1>} : vector<8x512xi32>
    %c512_i32 = arith.constant 512 : i32
    %28 = vector.broadcast %c512_i32 : i32 to vector<8x512xi32>
    %29 = arith.muli %26, %28 : vector<8x512xi32>
    %30 = arith.addi %29, %27 : vector<8x512xi32>
    %c256_i32 = arith.constant 256 : i32
    %31 = vector.broadcast %c256_i32 : i32 to vector<8x512xi32>
    %32 = arith.cmpi slt, %30, %31 : vector<8x512xi32>
    %cst_11 = arith.constant 0.000000e+00 : f32
    %33 = vector.broadcast %cst_11 : f32 to vector<8x512xf32>
    %34 = arith.select %32, %22, %33 : vector<8x512xi1>, vector<8x512xf32>
    %c0_12 = arith.constant 0 : index
    %c0_13 = arith.constant 0 : index
    %35 = vector.load %arg5[%c0_12, %c0_13] : memref<8x512xf32, #tpu.memory_space<vmem>>, vector<8x512xf32>
    tpu.vector_store %arg5[%c0_12, %c0_13], %34 {strides = array<i32>} : memref<8x512xf32, #tpu.memory_space<vmem>>, vector<8x512xf32>,
    return
  }
  func.func @transform_0(%arg0: i32) -> (i32, i32) {
    %c0_i32 = arith.constant 0 : i32
    %c0_i32_0 = arith.constant 0 : i32
    return %arg0, %c0_i32 : i32, i32
  }
  func.func @transform_1(%arg0: i32) -> (i32, i32) {
    %c0_i32 = arith.constant 0 : i32
    %c0_i32_0 = arith.constant 0 : i32
    return %arg0, %c0_i32 : i32, i32
  }
  func.func @transform_2(%arg0: i32) -> (i32, i32) {
    %c0_i32 = arith.constant 0 : i32
    %c0_i32_0 = arith.constant 0 : i32
    return %arg0, %c0_i32 : i32, i32
  }
  func.func @transform_3(%arg0: i32) -> (i32, i32) {
    %c0_i32 = arith.constant 0 : i32
    %c0_i32_0 = arith.constant 0 : i32
    return %arg0, %c0_i32 : i32, i32
  }
  func.func @transform_4(%arg0: i32) -> (i32, i32) {
    %c0_i32 = arith.constant 0 : i32
    %c0_i32_0 = arith.constant 0 : i32
    return %arg0, %c0_i32 : i32, i32
  }
}

</mosaic_0001>

<llo_original>
// kernel: tpu_custom_call.1
$region0: #{tpu_custom_call.1}
  #allocation0 [shape = 'u32[]', space=smem, size = 0x4, offset = 0x4, fixed_abs, tag = 'smem constant byte address 0x4 - core index']
  #allocation1 [shape = 'u32[144,128]{1,0:T(1,128)}', space=vmem, size = 0x12000, scoped, tag = 'internal scratch']
  %s0 = inlined_call_operand.hbm [shape: f32[8,512], index: 0, kind: input, shape index: {}]
  %s1 = inlined_call_operand.hbm [shape: f32[8,512], index: 1, kind: input, shape index: {}]
  %s2 = inlined_call_operand.hbm [shape: f32[8,512], index: 2, kind: input, shape index: {}]
  %s3 = inlined_call_operand.hbm [shape: f32[8,512], index: 3, kind: input, shape index: {}]
  %s4 = inlined_call_operand.hbm [shape: f32[8,512], index: 4, kind: output, shape index: {}]
  %s5 = sld [smem:[#allocation0]]
  $region42: #{tpu_custom_call.1} parent=0
    _
  %s7 = ssub.s32 1, %s5
  %s8 = scalar_select 0, %s7, %s5
  $region1: #{tpu_custom_call.1} parent=0
    #allocation2 [shape = 'u8[16384]{0}', space=vmem, size = 0x4000, scoped, tag = 'input window, operand 0, single buffered']
    #allocation3 [shape = 's32[1]{0}', space=sflag, size = 0x4, scoped, tag = 'scoped memory for tpu_custom_call.1']
    #allocation4 [shape = 's32[1]{0}', space=sflag, size = 0x4, scoped, tag = 'scoped memory for tpu_custom_call.1']
    #allocation5 [shape = 'u8[16384]{0}', space=vmem, size = 0x4000, scoped, tag = 'input window, operand 1, single buffered']
    #allocation6 [shape = 's32[1]{0}', space=sflag, size = 0x4, scoped, tag = 'scoped memory for tpu_custom_call.1']
    #allocation7 [shape = 'u8[16384]{0}', space=vmem, size = 0x4000, scoped, tag = 'input window, operand 2, single buffered']
    #allocation8 [shape = 'u8[16384]{0}', space=vmem, size = 0x4000, scoped, tag = 'input window, operand 3, single buffered']
    #allocation9 [shape = 's32[1]{0}', space=sflag, size = 0x4, scoped, tag = 'scoped memory for tpu_custom_call.1']
    #allocation10 [shape = 'u8[16384]{0}', space=vmem, size = 0x4000, scoped, tag = 'output window, operand 0, single buffered']
    %9 = vsyncpa [#allocation3], 0
    %10 = vsyncpa [#allocation6], 0
    %11 = vsyncpa [#allocation9], 0
    %12 = vsyncpa [#allocation4], 0
    // Predicated region
    $region2: #{tpu_custom_call.1} parent=1 // pred_check
      _
    $region3: #{tpu_custom_call.1} parent=1 // pred_check_branch
      %14 = sbr.rel (0) target = $region5
    $region4: #{tpu_custom_call.1} parent=1 // pred_region
      %s16 = ssub.s32 512, 512
      %17 = vsyncadd [#allocation3], %s16
      %s19 = sshll.u32 [#allocation2], 4
      %s20 = int_to_ptr.vmem [resolvable:$true] %s19
      %22 = dma.hbm_to_vmem [thread:$0]  %s0, 512, %s20, [#allocation3]
    $region5: #{tpu_custom_call.1} parent=1 // pred_fallthru
      _
    // Predicated region
    $region6: #{tpu_custom_call.1} parent=1 // pred_check
      _
    $region7: #{tpu_custom_call.1} parent=1 // pred_check_branch
      %24 = sbr.rel (0) target = $region9
    $region8: #{tpu_custom_call.1} parent=1 // pred_region
      %s26 = ssub.s32 512, 512
      %27 = vsyncadd [#allocation6], %s26
      %s29 = sshll.u32 [#allocation5], 4
      %s30 = int_to_ptr.vmem [resolvable:$true] %s29
      %32 = dma.hbm_to_vmem [thread:$0]  %s1, 512, %s30, [#allocation6]
    $region9: #{tpu_custom_call.1} parent=1 // pred_fallthru
      _
    // Predicated region
    $region10: #{tpu_custom_call.1} parent=1 // pred_check
      _
    $region11: #{tpu_custom_call.1} parent=1 // pred_check_branch
      %34 = sbr.rel (0) target = $region13
    $region12: #{tpu_custom_call.1} parent=1 // pred_region
      %s36 = ssub.s32 512, 512
      %37 = vsyncadd [#allocation6], %s36
      %s39 = sshll.u32 [#allocation7], 4
      %s40 = int_to_ptr.vmem [resolvable:$true] %s39
      %42 = dma.hbm_to_vmem [thread:$0]  %s2, 512, %s40, [#allocation6]
    $region13: #{tpu_custom_call.1} parent=1 // pred_fallthru
      _
    // Predicated region
    $region14: #{tpu_custom_call.1} parent=1 // pred_check
      _
    $region15: #{tpu_custom_call.1} parent=1 // pred_check_branch
      %44 = sbr.rel (0) target = $region17
    $region16: #{tpu_custom_call.1} parent=1 // pred_region
      %s46 = ssub.s32 512, 512
      %47 = vsyncadd [#allocation9], %s46
      %s49 = sshll.u32 [#allocation8], 4
      %s50 = int_to_ptr.vmem [resolvable:$true] %s49
      %52 = dma.hbm_to_vmem [thread:$0]  %s3, 512, %s50, [#allocation9]
    $region17: #{tpu_custom_call.1} parent=1 // pred_fallthru
      _
    // Predicated region
    $region18: #{tpu_custom_call.1} parent=1 // pred_check
      _
    $region19: #{tpu_custom_call.1} parent=1 // pred_check_branch
      %54 = sbr.rel (0) target = $region21
    $region20: #{tpu_custom_call.1} parent=1 // pred_region
      %55 = dma.done [#allocation3], 512
    $region21: #{tpu_custom_call.1} parent=1 // pred_fallthru
      _
    // Predicated region
    $region22: #{tpu_custom_call.1} parent=1 // pred_check
      _
    $region23: #{tpu_custom_call.1} parent=1 // pred_check_branch
      %57 = sbr.rel (0) target = $region25
    $region24: #{tpu_custom_call.1} parent=1 // pred_region
      %58 = dma.done [#allocation6], 512
    $region25: #{tpu_custom_call.1} parent=1 // pred_fallthru
      _
    // Predicated region
    $region26: #{tpu_custom_call.1} parent=1 // pred_check
      _
    $region27: #{tpu_custom_call.1} parent=1 // pred_check_branch
      %60 = sbr.rel (0) target = $region29
    $region28: #{tpu_custom_call.1} parent=1 // pred_region
      %61 = dma.done [#allocation6], 512
    $region29: #{tpu_custom_call.1} parent=1 // pred_fallthru
      _
    // Predicated region
    $region30: #{tpu_custom_call.1} parent=1 // pred_check
      _
    $region31: #{tpu_custom_call.1} parent=1 // pred_check_branch
      %63 = sbr.rel (0) target = $region33
    $region32: #{tpu_custom_call.1} parent=1 // pred_region
      %64 = dma.done [#allocation9], 512
    $region33: #{tpu_custom_call.1} parent=1 // pred_fallthru
      _
    %v65 = vld [vmem:[#allocation2] sm:$0xff]
    %v66 = vld [vmem:[#allocation2 + $0x8] sm:$0xff]
    %v67 = vld [vmem:[#allocation2 + $0x10] sm:$0xff]
    %v68 = vld [vmem:[#allocation2 + $0x18] sm:$0xff]
    %v69 = vld [vmem:[#allocation5] sm:$0xff]
    %v70 = vld [vmem:[#allocation5 + $0x8] sm:$0xff]
    %v71 = vld [vmem:[#allocation5 + $0x10] sm:$0xff]
    %v72 = vld [vmem:[#allocation5 + $0x18] sm:$0xff]
    %v73 = vsub.f32 %v65, %v69
    %v74 = vsub.f32 %v66, %v70
    %v75 = vsub.f32 %v67, %v71
    %v76 = vsub.f32 %v68, %v72
    %v77 = vld [vmem:[#allocation7] sm:$0xff]
    %v78 = vld [vmem:[#allocation7 + $0x8] sm:$0xff]
    %v79 = vld [vmem:[#allocation7 + $0x10] sm:$0xff]
    %v80 = vld [vmem:[#allocation7 + $0x18] sm:$0xff]
    %v81 = vrcp.pop %v77
    %v82 = vmul.f32 1.0, %v81
    %v83 = vrcp.pop %v78
    %v84 = vmul.f32 1.0, %v83
    %v85 = vrcp.pop %v79
    %v86 = vmul.f32 1.0, %v85
    %v87 = vrcp.pop %v80
    %v88 = vmul.f32 1.0, %v87
    %v89 = vmul.f32 %v73, %v73
    %v90 = vmul.f32 %v74, %v74
    %v91 = vmul.f32 %v75, %v75
    %v92 = vmul.f32 %v76, %v76
    %v93 = vmul.f32 %v89, -0.5
    %v94 = vmul.f32 %v90, -0.5
    %v95 = vmul.f32 %v91, -0.5
    %v96 = vmul.f32 %v92, -0.5
    %v97 = vmul.f32 %v93, %v82
    %v98 = vmul.f32 %v94, %v84
    %v99 = vmul.f32 %v95, %v86
    %v100 = vmul.f32 %v96, %v88
    %v101 = vmul.f32 %v97, 1.442695
    %v102 = vpow.pop %v101
    %v103 = vmul.f32 %v98, 1.442695
    %v104 = vpow.pop %v103
    %v105 = vmul.f32 %v99, 1.442695
    %v106 = vpow.pop %v105
    %v107 = vmul.f32 %v100, 1.442695
    %v108 = vpow.pop %v107
    %v109 = vmul.f32 %v77, 6.2831855
    %v110 = vmul.f32 %v78, 6.2831855
    %v111 = vmul.f32 %v79, 6.2831855
    %v112 = vmul.f32 %v80, 6.2831855
    %v113 = vrsqrt.pop %v109
    %v114 = vrsqrt.pop %v110
    %v115 = vrsqrt.pop %v111
    %v116 = vrsqrt.pop %v112
    %v117 = vmul.f32 %v102, %v113
    %v118 = vmul.f32 %v104, %v114
    %v119 = vmul.f32 %v106, %v115
    %v120 = vmul.f32 %v108, %v116
    %v121 = vadd.f32 %v117, 1e-09
    %v122 = vadd.f32 %v118, 1e-09
    %v123 = vadd.f32 %v119, 1e-09
    %v124 = vadd.f32 %v120, 1e-09
    %v125 = vlog2.pop %v121
    %v126 = vmul.f32 %v125, 0.6931472
    %v127 = vlog2.pop %v122
    %v128 = vmul.f32 %v127, 0.6931472
    %v129 = vlog2.pop %v123
    %v130 = vmul.f32 %v129, 0.6931472
    %v131 = vlog2.pop %v124
    %v132 = vmul.f32 %v131, 0.6931472
    %v133 = vand.u32 2147483647, %v126
    %v134 = vand.u32 2147483647, %v128
    %v135 = vand.u32 2147483647, %v130
    %v136 = vand.u32 2147483647, %v132
    %v137 = vmul.f32 %v133, 0.5
    %v138 = vmul.f32 %v134, 0.5
    %v139 = vmul.f32 %v135, 0.5
    %v140 = vmul.f32 %v136, 0.5
    %v141 = vld [vmem:[#allocation8] sm:$0xff]
    %v142 = vld [vmem:[#allocation8 + $0x8] sm:$0xff]
    %v143 = vld [vmem:[#allocation8 + $0x10] sm:$0xff]
    %v144 = vld [vmem:[#allocation8 + $0x18] sm:$0xff]
    %v145 = vmul.f32 %v137, %v141
    %v146 = vmul.f32 %v138, %v142
    %v147 = vmul.f32 %v139, %v143
    %v148 = vmul.f32 %v140, %v144
    %s149 = smul.u32 0, 8
    %v150 = vlaneseq
    %v151 = vshrl.u32 %v150, 7
    %v152 = vstv %s149
    %v153 = vadd.s32 %v151, %v152
    %v154 = vlaneseq
    %v155 = vand.u32 %v154, 127
    %v156 = vadd.s32 %v155, 128
    %v157 = vadd.s32 %v155, 256
    %v158 = vadd.s32 %v155, 384
    %v159 = vmul.u32 %v153, 512
    %v160 = vadd.s32 %v159, %v155
    %v161 = vadd.s32 %v159, %v156
    %v162 = vadd.s32 %v159, %v157
    %v163 = vadd.s32 %v159, %v158
    %vm164 = vcmp.lt.s32.totalorder %v160, 256
    %vm165 = vcmp.lt.s32.totalorder %v161, 256
    %vm166 = vcmp.lt.s32.totalorder %v162, 256
    %vm167 = vcmp.lt.s32.totalorder %v163, 256
    %v168 = vsel %vm164, %v145, 0.0
    %v169 = vsel %vm165, %v146, 0.0
    %v170 = vsel %vm166, %v147, 0.0
    %v171 = vsel %vm167, %v148, 0.0
    %172 = vst [vmem:[#allocation10] sm:$0xff] %v168
    %173 = vst [vmem:[#allocation10 + $0x8] sm:$0xff] %v169
    %174 = vst [vmem:[#allocation10 + $0x10] sm:$0xff] %v170
    %175 = vst [vmem:[#allocation10 + $0x18] sm:$0xff] %v171
    // Predicated region
    $region34: #{tpu_custom_call.1} parent=1 // pred_check
      _
    $region35: #{tpu_custom_call.1} parent=1 // pred_check_branch
      %177 = sbr.rel (0) target = $region37
    $region36: #{tpu_custom_call.1} parent=1 // pred_region
      %s179 = ssub.s32 512, 512
      %180 = vsyncadd [#allocation4], %s179
      %s182 = sshll.u32 [#allocation10], 4
      %s183 = int_to_ptr.vmem [resolvable:$true] %s182
      %185 = dma.vmem_to_hbm [thread:$0]  %s183, 512, %s4, [#allocation4]
    $region37: #{tpu_custom_call.1} parent=1 // pred_fallthru
      _
    // Predicated region
    $region38: #{tpu_custom_call.1} parent=1 // pred_check
      _
    $region39: #{tpu_custom_call.1} parent=1 // pred_check_branch
      %187 = sbr.rel (0) target = $region41
    $region40: #{tpu_custom_call.1} parent=1 // pred_region
      %188 = dma.done [#allocation4], 512
    $region41: #{tpu_custom_call.1} parent=1 // pred_fallthru
      _
    %189 = vsyncpa [#allocation3], 1
    %190 = vsyncpa [#allocation6], 1
    %191 = vsyncpa [#allocation9], 1
    %192 = vsyncpa [#allocation4], 1

</llo_original>
